<compile_context>
chip_gen: v7x
topology: tpu7x:2x2x1
jax: 0.10.0
libtpu: 0.0.40
codegen_flags: <defaults>
</compile_context>

<pallas_src>
import math
from functools import partial

import jax
import jax.numpy as jnp
from jax.experimental import pallas as pl
from jax.experimental.pallas import tpu as pltpu


_TARGET_BLOCK_BYTES = 2 * 1024 * 1024   # ~2 MiB/block: 2 arrays x 2 buffers ~ 8 MiB VMEM
_MAX_BLOCK_ROWS = 512                   # row block cap (multiple of 8)
_MAX_BLOCK_COLS = 32768                 # absolute lane-dim cap (large multiple of 128)


def _copy_kernel(x_ref, o_ref):
    # Pure tile copy (identity). Output buffer is aliased to the input buffer,
    # and in/out index maps are identical, so the in-place write is safe.
    o_ref[...] = x_ref[...]


def _pick_block(dim, unit, cap):
    """Block extent for one axis.

    Returns either the full dim (always a legal block extent) when it fits the
    cap, or a `unit`-aligned block <= cap; non-divisible remainders are handled
    by the pl.cdiv grid (masked edge block).
    """
    if dim <= max(cap, unit):
        return dim
    return max(unit, (cap // unit) * unit)


@partial(jax.jit, static_argnums=(1,))
def flatten_layer_pallas(x, dimA):
    """Pallas equivalent of torch.flatten(x, start_dim=dimA)."""
    shape = x.shape
    ndim = len(shape)
    d = dimA if dimA >= 0 else dimA + ndim  # torch-style negative dims

    lead = shape[:d]
    rows = int(math.prod(lead)) if lead else 1
    cols = int(math.prod(shape[d:])) if shape[d:] else 1
    out_shape_final = tuple(lead) + (cols,)

    # NOTE: in a pure-JAX pipeline the correct answer is just
    #   return jnp.reshape(x, out_shape_final)        # metadata-only, zero cost
    # The Pallas path below exists because a kernel is mandated.

    # 2-D working view (rows, cols).
    x2 = jnp.reshape(x, (rows, cols))

    itemsize = jnp.dtype(x.dtype).itemsize
    # Row block: multiple of 8 (sublane) or the full dim, capped.
    br = _pick_block(rows, 8, _MAX_BLOCK_ROWS)
    # Column block: as wide as possible (lane-dense, multiple of 128 or the
    # full dim) while keeping the whole (br, bc) block near the target bytes.
    col_budget = max(128, _TARGET_BLOCK_BYTES // (br * itemsize))
    bc = _pick_block(cols, 128, min(col_budget, _MAX_BLOCK_COLS))

    grid = (pl.cdiv(rows, br), pl.cdiv(cols, bc))  # edge blocks handled by Pallas

    out2 = pl.pallas_call(
        _copy_kernel,
        out_shape=jax.ShapeDtypeStruct((rows, cols), x.dtype),
        grid_spec=pltpu.PrefetchScalarGridSpec(
            num_scalar_prefetch=0,
            grid=grid,
            in_specs=[pl.BlockSpec((br, bc), lambda i, j: (i, j))],
            out_specs=pl.BlockSpec((br, bc), lambda i, j: (i, j)),
        ),
        # Output 0 aliases input 0: no extra full-size HBM buffer; XLA can run
        # the copy in place (operand is an internal temp with no other uses).
        input_output_aliases={0: 0},
        compiler_params=pltpu.CompilerParams(
            # Independent grid axes -> shard across v7x's 2 TensorCores.
            dimension_semantics=("parallel", "parallel"),
            # Explicit VMEM budget; blocks are sized so 2x2 buffers stay well
            # under this on every generation.
            vmem_limit_bytes=32 * 1024 * 1024,
        ),
    )(x2)

    return jnp.reshape(out2, out_shape_final)


if __name__ == "__main__":
    key = jax.random.PRNGKey(0)

    # Test 1: typical NCHW flatten with dimA=1.
    x = jax.random.normal(key, (2, 4, 16, 16), dtype=jnp.float32)
    dimA = 1
    out = flatten_layer_pallas(x, dimA)
    out = jax.block_until_ready(out)
    ref = jnp.reshape(x, (2, 4 * 16 * 16))
    assert out.shape == ref.shape, (out.shape, ref.shape)
    assert out.dtype == ref.dtype
    assert bool(jnp.all(out == ref))

    # Test 2: odd (non-128-aligned) dims, flatten starting deeper in the shape.
    key2 = jax.random.split(key)[0]
    y = jax.random.normal(key2, (3, 5, 8, 24), dtype=jnp.float32)
    out2 = flatten_layer_pallas(y, 2)
    out2 = jax.block_until_ready(out2)
    ref2 = jnp.reshape(y, (3, 5, 8 * 24))
    assert out2.shape == ref2.shape, (out2.shape, ref2.shape)
    assert bool(jnp.all(out2 == ref2))

    print("KERNEL_OK")
</pallas_src>

<mosaic_0001>
module attributes {stable_mosaic.version = 11 : i64} {
  func.func @_copy_kernel(%arg0: i32, %arg1: i32, %arg2: memref<2x1024xf32, #tpu.memory_space<vmem>>, %arg3: memref<2x1024xf32, #tpu.memory_space<vmem>>) attributes {dimension_semantics = [#tpu.dimension_semantics<parallel>, #tpu.dimension_semantics<parallel>], iteration_bounds = array<i64: 1, 1>, scalar_prefetch = 0 : i64, scratch_operands = 0 : i64, tpu.core_type = #tpu.core_type<tc>, window_params = [{transform_indices = @transform_0, window_bounds = array<i64: 2, 1024>}, {transform_indices = @transform_1, window_bounds = array<i64: 2, 1024>}]} {
    %c0 = arith.constant 0 : index
    %c0_0 = arith.constant 0 : index
    %0 = vector.load %arg2[%c0, %c0_0] : memref<2x1024xf32, #tpu.memory_space<vmem>>, vector<2x1024xf32>
    %c0_1 = arith.constant 0 : index
    %c0_2 = arith.constant 0 : index
    %1 = vector.load %arg3[%c0_1, %c0_2] : memref<2x1024xf32, #tpu.memory_space<vmem>>, vector<2x1024xf32>
    tpu.vector_store %arg3[%c0_1, %c0_2], %0 {strides = array<i32>} : memref<2x1024xf32, #tpu.memory_space<vmem>>, vector<2x1024xf32>,
    return
  }
  func.func @transform_0(%arg0: i32, %arg1: i32) -> (i32, i32) {
    %c0_i32 = arith.constant 0 : i32
    return %arg0, %arg1 : i32, i32
  }
  func.func @transform_1(%arg0: i32, %arg1: i32) -> (i32, i32) {
    %c0_i32 = arith.constant 0 : i32
    return %arg0, %arg1 : i32, i32
  }
}

</mosaic_0001>

<llo_original>
// kernel: flatten_layer_pallas.1
$region0: #{flatten_layer_pallas.1}
  #allocation0 [shape = 'u32[]', space=smem, size = 0x4, offset = 0x4, fixed_abs, tag = 'smem constant byte address 0x4 - core index']
  #allocation1 [shape = 'u32[144,128]{1,0:T(1,128)}', space=vmem, size = 0x12000, scoped, tag = 'internal scratch']
  %s0 = inlined_call_operand.hbm [shape: f32[2,1024], index: 0, kind: input, shape index: {}, may-alias: {0,1}]
  %s1 = inlined_call_operand.hbm [shape: f32[2,1024], index: 1, kind: output, shape index: {}, may-alias: {0,1}]
  %s2 = sld [smem:[#allocation0]]
  $region18: #{flatten_layer_pallas.1} parent=0
    _
  %s4 = ssub.s32 1, %s2
  %s5 = scalar_select 0, %s4, %s2
  $region1: #{flatten_layer_pallas.1} parent=0
    #allocation2 [shape = 'u8[8192]{0}', space=vmem, size = 0x2000, scoped, tag = 'input window, operand 0, single buffered']
    #allocation3 [shape = 's32[1]{0}', space=sflag, size = 0x4, scoped, tag = 'scoped memory for flatten_layer_pallas.1']
    #allocation4 [shape = 's32[1]{0}', space=sflag, size = 0x4, scoped, tag = 'scoped memory for flatten_layer_pallas.1']
    #allocation5 [shape = 'u8[8192]{0}', space=vmem, size = 0x2000, scoped, tag = 'output window, operand 0, single buffered']
    %6 = vsyncpa [#allocation3], 0
    %7 = vsyncpa [#allocation4], 0
    // Predicated region
    $region2: #{flatten_layer_pallas.1} parent=1 // pred_check
      _
    $region3: #{flatten_layer_pallas.1} parent=1 // pred_check_branch
      %9 = sbr.rel (0) target = $region5
    $region4: #{flatten_layer_pallas.1} parent=1 // pred_region
      %s11 = ssub.s32 256, 256
      %12 = vsyncadd [#allocation3], %s11
      %s14 = sshll.u32 [#allocation2], 4
      %s15 = int_to_ptr.vmem [resolvable:$true] %s14
      %17 = dma.hbm_to_vmem [thread:$0]  %s0, 256, %s15, [#allocation3]
    $region5: #{flatten_layer_pallas.1} parent=1 // pred_fallthru
      _
    // Predicated region
    $region6: #{flatten_layer_pallas.1} parent=1 // pred_check
      _
    $region7: #{flatten_layer_pallas.1} parent=1 // pred_check_branch
      %19 = sbr.rel (0) target = $region9
    $region8: #{flatten_layer_pallas.1} parent=1 // pred_region
      %20 = dma.done [#allocation3], 256
    $region9: #{flatten_layer_pallas.1} parent=1 // pred_fallthru
      _
    %v21 = vld [vmem:[#allocation2] sm:$0xff]
    %v22 = vld [vmem:[#allocation2 + $0x8] sm:$0xff]
    %23 = vst [vmem:[#allocation5] sm:$0xff] %v21
    %24 = vst [vmem:[#allocation5 + $0x8] sm:$0xff] %v22
    // Predicated region
    $region10: #{flatten_layer_pallas.1} parent=1 // pred_check
      _
    $region11: #{flatten_layer_pallas.1} parent=1 // pred_check_branch
      %26 = sbr.rel (0) target = $region13
    $region12: #{flatten_layer_pallas.1} parent=1 // pred_region
      %s28 = ssub.s32 256, 256
      %29 = vsyncadd [#allocation4], %s28
      %s31 = sshll.u32 [#allocation5], 4
      %s32 = int_to_ptr.vmem [resolvable:$true] %s31
      %34 = dma.vmem_to_hbm [thread:$0]  %s32, 256, %s1, [#allocation4]
    $region13: #{flatten_layer_pallas.1} parent=1 // pred_fallthru
      _
    // Predicated region
    $region14: #{flatten_layer_pallas.1} parent=1 // pred_check
      _
    $region15: #{flatten_layer_pallas.1} parent=1 // pred_check_branch
      %36 = sbr.rel (0) target = $region17
    $region16: #{flatten_layer_pallas.1} parent=1 // pred_region
      %37 = dma.done [#allocation4], 256
    $region17: #{flatten_layer_pallas.1} parent=1 // pred_fallthru
      _
    %38 = vsyncpa [#allocation3], 1
    %39 = vsyncpa [#allocation4], 1

</llo_original>
